<compile_context>
chip_gen: v5e
topology: v5e:2x2
jax: 0.10.0
libtpu: 0.0.40
codegen_flags: <defaults>
</compile_context>

<pallas_src>
import functools

import jax
import jax.numpy as jnp
from jax import lax
from jax.experimental import pallas as pl
from jax.experimental.pallas import tpu as pltpu


def _round_up(v, m):
    return ((v + m - 1) // m) * m


def _finalize_std(s1, s2, d):
    mean = s1 * (1.0 / d)
    var = (s2 - s1 * mean) * (1.0 / (d - 1))   # Bessel's correction (ddof=1)
    return jnp.sqrt(jnp.maximum(var, 0.0))


def _ts_stddev_kernel(x_ref, band_ref, o_ref, *scratch, d, T, TK):
    band = band_ref[...]

    if not scratch:
        # Single K block: whole row is resident, no accumulators needed.
        x = x_ref[...].astype(jnp.float32)
        x = x - x[:, 0:1]                       # shift-invariance of std
        s1 = jnp.dot(x, band, preferred_element_type=jnp.float32)
        s2 = jnp.dot(x * x, band, preferred_element_type=jnp.float32)
        o_ref[...] = _finalize_std(s1, s2, d).astype(o_ref.dtype)
        return

    s1_ref, s2_ref, shift_ref = scratch
    k = pl.program_id(1)
    nk = pl.num_programs(1)

    @pl.when(k == 0)
    def _():
        s1_ref[...] = jnp.zeros_like(s1_ref)
        s2_ref[...] = jnp.zeros_like(s2_ref)
        shift_ref[...] = x_ref[:, 0:1].astype(jnp.float32)

    x = x_ref[...].astype(jnp.float32) - shift_ref[...]
    if T % TK != 0:
        # Ragged last K block: zero columns >= T so garbage VMEM contents
        # (possible NaNs) cannot leak through the zero band rows.
        col = k * TK + lax.broadcasted_iota(jnp.int32, x.shape, 1)
        x = jnp.where(col < T, x, 0.0)

    s1_ref[...] += jnp.dot(x, band, preferred_element_type=jnp.float32)
    s2_ref[...] += jnp.dot(x * x, band, preferred_element_type=jnp.float32)

    @pl.when(k == nk - 1)
    def _():
        o_ref[...] = _finalize_std(s1_ref[...], s2_ref[...], d).astype(o_ref.dtype)


def ts_stddev(x, d=10, stride=10):
    """x: (batch, n, T) -> (batch, n, w), w = (T - d)//stride + 1 (torch.std, ddof=1)."""
    if d < 2:
        raise ValueError("ts_stddev requires d >= 2 (torch.std with ddof=1 is NaN for d == 1).")
    b, n, T = x.shape
    w_out = (T - d) // stride + 1
    if w_out < 1:
        raise ValueError("need T >= d")
    M = b * n
    x2 = x.reshape(M, T)                        # no pad, no dtype cast (done in-kernel)

    w_pad = _round_up(w_out, 128)               # lane-dense output stores

    # Time (K) tiling: single block for moderate T, else 512-wide K tiles
    # accumulated in VMEM scratch (bounds VMEM to TM x TK on v5e/v7x).
    if T <= 1024:
        TK, nk = T, 1
    else:
        TK = 512
        nk = pl.cdiv(T, TK)
    T_pad = nk * TK

    # Constant banded window-selector: B[t, i] = 1 iff valid window i covers t.
    t_idx = lax.broadcasted_iota(jnp.int32, (T_pad, w_pad), 0)
    w_idx = lax.broadcasted_iota(jnp.int32, (T_pad, w_pad), 1)
    off = t_idx - w_idx * stride
    band = ((off >= 0) & (off < d) & (w_idx < w_out)).astype(jnp.float32)

    # Row-tile sizing from a conservative VMEM budget (covers the v5e 16 MiB
    # scoped default raised via vmem_limit_bytes and v7x's ~28-32 MiB per TC).
    isz = jnp.dtype(x.dtype).itemsize
    per_row = (2 * TK * isz                     # double-buffered input block
               + 2 * TK * 4                     # in-kernel f32 copy + x*x temp
               + 2 * w_pad * 4)                 # double-buffered output block
    if nk > 1:
        per_row += 2 * w_pad * 4 + 4            # s1/s2/shift accumulators
    band_bytes = 2 * TK * w_pad * 4             # double-buffered band block
    budget = 12 * 1024 * 1024
    tm_max = max(8, ((budget - band_bytes) // per_row) // 8 * 8)
    tm_max = min(tm_max, 1024)

    if M <= 8:
        TM = M                                  # block dim == full dim is legal
    else:
        TM = min(tm_max, _round_up(M, 8))
        if TM >= M:                             # single row block would idle a v7x core
            TM = _round_up(pl.cdiv(M, 2), 8)

    grid = (pl.cdiv(M, TM), nk)

    scratch_shapes = []
    if nk > 1:
        scratch_shapes = [
            pltpu.VMEM((TM, w_pad), jnp.float32),
            pltpu.VMEM((TM, w_pad), jnp.float32),
            pltpu.VMEM((TM, 1), jnp.float32),
        ]

    kernel = functools.partial(_ts_stddev_kernel, d=d, T=T, TK=TK)

    out = pl.pallas_call(
        kernel,
        out_shape=jax.ShapeDtypeStruct((M, w_pad), jnp.float32),
        grid_spec=pltpu.PrefetchScalarGridSpec(
            num_scalar_prefetch=0,
            grid=grid,
            in_specs=[
                pl.BlockSpec((TM, TK), lambda i, k: (i, k)),
                pl.BlockSpec((TK, w_pad), lambda i, k: (k, 0)),
            ],
            out_specs=pl.BlockSpec((TM, w_pad), lambda i, k: (i, 0)),
            scratch_shapes=scratch_shapes,
        ),
        compiler_params=pltpu.CompilerParams(
            dimension_semantics=("parallel", "arbitrary"),
            vmem_limit_bytes=28 * 1024 * 1024,
        ),
    )(x2, band)

    return out[:, :w_out].reshape(b, n, w_out)


def _reference(x, d=10, stride=10):
    b, n, T = x.shape
    w_out = (T - d) // stride + 1
    cols = []
    for i in range(w_out):
        s = i * stride
        cols.append(jnp.std(x[:, :, s:s + d], axis=2, ddof=1))  # unbiased, like torch.std
    return jnp.stack(cols, axis=-1)


if __name__ == "__main__":
    key = jax.random.PRNGKey(0)
    batch, n, T = 2, 4, 40                      # d=10, stride=10 -> w = 4
    # Non-zero mean exercises the shift-invariant numerics path.
    x = 5.0 + jax.random.normal(key, (batch, n, T), dtype=jnp.float32)

    z = ts_stddev(x, d=10, stride=10)
    z = jax.block_until_ready(z)

    z_ref = _reference(x, d=10, stride=10)
    assert z.shape == (batch, n, 4), z.shape
    assert jnp.allclose(z, z_ref, atol=1e-4, rtol=1e-4), "mismatch vs reference"

    print("KERNEL_OK")
</pallas_src>

<mosaic_0001>
module attributes {stable_mosaic.version = 11 : i64} {
  func.func @_ts_stddev_kernel(%arg0: i32, %arg1: i32, %arg2: memref<8x40xf32, #tpu.memory_space<vmem>>, %arg3: memref<40x128xf32, #tpu.memory_space<vmem>>, %arg4: memref<8x128xf32, #tpu.memory_space<vmem>>) attributes {dimension_semantics = [#tpu.dimension_semantics<parallel>, #tpu.dimension_semantics<arbitrary>], iteration_bounds = array<i64: 1, 1>, scalar_prefetch = 0 : i64, scratch_operands = 0 : i64, tpu.core_type = #tpu.core_type<tc>, window_params = [{transform_indices = @transform_0, window_bounds = array<i64: 8, 40>}, {transform_indices = @transform_1, window_bounds = array<i64: 40, 128>}, {transform_indices = @transform_2, window_bounds = array<i64: 8, 128>}]} {
    %c0 = arith.constant 0 : index
    %c0_0 = arith.constant 0 : index
    %0 = vector.load %arg3[%c0, %c0_0] : memref<40x128xf32, #tpu.memory_space<vmem>>, vector<40x128xf32>
    %c0_1 = arith.constant 0 : index
    %c0_2 = arith.constant 0 : index
    %1 = vector.load %arg2[%c0_1, %c0_2] : memref<8x40xf32, #tpu.memory_space<vmem>>, vector<8x40xf32>
    %2 = vector.extract_strided_slice %1 {offsets = [0, 0], sizes = [8, 1], strides = [1, 1]} : vector<8x40xf32> to vector<8x1xf32>
    %3 = vector.broadcast %2 : vector<8x1xf32> to vector<8x40xf32>
    %4 = arith.subf %1, %3 : vector<8x40xf32>
    %cst = arith.constant dense<0.000000e+00> : vector<8x128xf32>
    %5 = tpu.matmul %4, %0, %cst {dimension_numbers = #tpu.dot_dimension_numbers<[1], [0], [0], [1], [0, 0, 1, 1], [], []>} : vector<8x40xf32>, vector<40x128xf32>, vector<8x128xf32> -> vector<8x128xf32>
    %6 = arith.mulf %4, %4 : vector<8x40xf32>
    %cst_3 = arith.constant dense<0.000000e+00> : vector<8x128xf32>
    %7 = tpu.matmul %6, %0, %cst_3 {dimension_numbers = #tpu.dot_dimension_numbers<[1], [0], [0], [1], [0, 0, 1, 1], [], []>} : vector<8x40xf32>, vector<40x128xf32>, vector<8x128xf32> -> vector<8x128xf32>
    %cst_4 = arith.constant 1.000000e-01 : f32
    %8 = vector.broadcast %cst_4 : f32 to vector<8x128xf32>
    %9 = arith.mulf %5, %8 : vector<8x128xf32>
    %10 = arith.mulf %5, %9 : vector<8x128xf32>
    %11 = arith.subf %7, %10 : vector<8x128xf32>
    %cst_5 = arith.constant 0.111111112 : f32
    %12 = vector.broadcast %cst_5 : f32 to vector<8x128xf32>
    %13 = arith.mulf %11, %12 : vector<8x128xf32>
    %cst_6 = arith.constant 0.000000e+00 : f32
    %14 = vector.broadcast %cst_6 : f32 to vector<8x128xf32>
    %15 = arith.maximumf %13, %14 : vector<8x128xf32>
    %16 = math.sqrt %15 : vector<8x128xf32>
    %c0_7 = arith.constant 0 : index
    %c0_8 = arith.constant 0 : index
    %17 = vector.load %arg4[%c0_7, %c0_8] : memref<8x128xf32, #tpu.memory_space<vmem>>, vector<8x128xf32>
    tpu.vector_store %arg4[%c0_7, %c0_8], %16 {strides = array<i32>} : memref<8x128xf32, #tpu.memory_space<vmem>>, vector<8x128xf32>,
    return
  }
  func.func @transform_0(%arg0: i32, %arg1: i32) -> (i32, i32) {
    %c0_i32 = arith.constant 0 : i32
    return %arg0, %arg1 : i32, i32
  }
  func.func @transform_1(%arg0: i32, %arg1: i32) -> (i32, i32) {
    %c0_i32 = arith.constant 0 : i32
    %c0_i32_0 = arith.constant 0 : i32
    return %arg1, %c0_i32 : i32, i32
  }
  func.func @transform_2(%arg0: i32, %arg1: i32) -> (i32, i32) {
    %c0_i32 = arith.constant 0 : i32
    %c0_i32_0 = arith.constant 0 : i32
    return %arg0, %c0_i32 : i32, i32
  }
}

</mosaic_0001>

<llo_original>
// kernel: tpu_custom_call.1
$region0: #{tpu_custom_call.1}
  #allocation0 [shape = 'u32[]', space=smem, size = 0x4, offset = 0x4, fixed_abs, tag = 'smem constant byte address 0x4 - core index']
  #allocation1 [shape = 'u32[72,128]{1,0:T(1,128)}', space=vmem, size = 0x9000, scoped, tag = 'internal scratch']
  %s0 = inlined_call_operand.hbm [shape: f32[8,40], index: 0, kind: input, shape index: {}]
  %s1 = inlined_call_operand.hbm [shape: f32[40,128], index: 1, kind: input, shape index: {}]
  %s2 = inlined_call_operand.hbm [shape: f32[8,128], index: 2, kind: output, shape index: {}]
  %s3 = sld [smem:[#allocation0]]
  $region26: #{tpu_custom_call.1} parent=0
    _
  %s5 = ssub.s32 1, %s3
  %s6 = scalar_select 0, %s5, %s3
  $region1: #{tpu_custom_call.1} parent=0
    #allocation2 [shape = 'u8[4096]{0}', space=vmem, size = 0x1000, scoped, tag = 'input window, operand 0, single buffered']
    #allocation3 [shape = 's32[1]{0}', space=sflag, size = 0x4, scoped, tag = 'scoped memory for tpu_custom_call.1']
    #allocation4 [shape = 's32[1]{0}', space=sflag, size = 0x4, scoped, tag = 'scoped memory for tpu_custom_call.1']
    #allocation5 [shape = 'u8[20480]{0}', space=vmem, size = 0x5000, scoped, tag = 'input window, operand 1, single buffered']
    #allocation6 [shape = 's32[1]{0}', space=sflag, size = 0x4, scoped, tag = 'scoped memory for tpu_custom_call.1']
    #allocation7 [shape = 'u8[4096]{0}', space=vmem, size = 0x1000, scoped, tag = 'output window, operand 0, single buffered']
    %7 = vsyncpa [#allocation3], 0
    %8 = vsyncpa [#allocation6], 0
    %9 = vsyncpa [#allocation4], 0
    // Predicated region
    $region2: #{tpu_custom_call.1} parent=1 // pred_check
      _
    $region3: #{tpu_custom_call.1} parent=1 // pred_check_branch
      %11 = sbr.rel (0) target = $region5
    $region4: #{tpu_custom_call.1} parent=1 // pred_region
      %13 = vsyncadd [#allocation3], 0
      %s15 = sshll.u32 %s0, 4
      %s16 = int_to_ptr.hbm [resolvable:$true] %s15
      %s17 = sshll.u32 [#allocation2], 4
      %s18 = int_to_ptr.vmem [resolvable:$true] %s17
      %20 = dma.hbm_to_vmem [thread:$0]  %s16, 128, %s18, [#allocation3]
    $region5: #{tpu_custom_call.1} parent=1 // pred_fallthru
      _
    // Predicated region
    $region6: #{tpu_custom_call.1} parent=1 // pred_check
      _
    $region7: #{tpu_custom_call.1} parent=1 // pred_check_branch
      %22 = sbr.rel (0) target = $region9
    $region8: #{tpu_custom_call.1} parent=1 // pred_region
      %24 = vsyncadd [#allocation6], 0
      %s25 = sshll.u32 %s1, 4
      %s26 = int_to_ptr.hbm [resolvable:$true] %s25
      %s27 = sshll.u32 [#allocation5], 4
      %s28 = int_to_ptr.vmem [resolvable:$true] %s27
      %33 = dma.hbm_to_vmem [thread:$0]  %s26, 640, %s28, [#allocation6], 128, 128, 8
    $region9: #{tpu_custom_call.1} parent=1 // pred_fallthru
      _
    // Predicated region
    $region10: #{tpu_custom_call.1} parent=1 // pred_check
      _
    $region11: #{tpu_custom_call.1} parent=1 // pred_check_branch
      %35 = sbr.rel (0) target = $region13
    $region12: #{tpu_custom_call.1} parent=1 // pred_region
      %37 = dma.done [#allocation3], 128
    $region13: #{tpu_custom_call.1} parent=1 // pred_fallthru
      _
    // Predicated region
    $region14: #{tpu_custom_call.1} parent=1 // pred_check
      _
    $region15: #{tpu_custom_call.1} parent=1 // pred_check_branch
      %39 = sbr.rel (0) target = $region17
    $region16: #{tpu_custom_call.1} parent=1 // pred_region
      %41 = dma.done [#allocation6], 640
    $region17: #{tpu_custom_call.1} parent=1 // pred_fallthru
      _
    %v42 = vld [vmem:[#allocation5] sm:$0xff]
    %v43 = vld [vmem:[#allocation5 + $0x8] sm:$0xff]
    %v44 = vld [vmem:[#allocation5 + $0x10] sm:$0xff]
    %v45 = vld [vmem:[#allocation5 + $0x18] sm:$0xff]
    %v46 = vld [vmem:[#allocation5 + $0x20] sm:$0xff]
    %v47 = vld [vmem:[#allocation2] sm:$0xff]
    %49 = vset.pattern.permute.xlu0 0
    %50 = vperm.xlu0 %49, %v47
    %v51 = vpop.permute.xlu0 %50
    %v53 = vsub.f32 %v47, %v51
    %vm54 = vcmask 326656
    %v56 = vsel %vm54, %v53, 0
    %58 = vmatpush.msra.mxu0 0.0
    %59 = vmatpush.msra.mxu0 0.0
    %60 = vmatpush.msra.mxu0 0.0
    %61 = vmatpush.msra.mxu0 0.0
    %62 = vmatpush.msra.mxu0 0.0
    %63 = vmatpush.msra.mxu0 0.0
    %64 = vmatpush.msra.mxu0 0.0
    %65 = vmatpush.msra.mxu0 0.0
    %66 = vmatpush.msra.mxu0 0.0
    %67 = vmatpush.msra.mxu0 0.0
    %68 = vmatpush.msra.mxu0 0.0
    %69 = vmatpush.msra.mxu0 %v46
    %70 = vmatpush.msra.mxu0 %v45
    %71 = vmatpush.msra.mxu0 %v44
    %72 = vmatpush.msra.mxu0 %v43
    %73 = vmatpush.msra.mxu0 %v42
    %74 = vmatmul.f32.gmra.mxu0 %v56
    %v75 = vpop.f32.mrf.mxu0
    %v76 = vadd.f32 0.0, %v75
    %77 = vdwg.mxu0
    %v78 = vmul.f32 %v53, %v53
    %v80 = vsel %vm54, %v78, 0
    %82 = vmatpush.msra.mxu0 0.0
    %83 = vmatpush.msra.mxu0 0.0
    %84 = vmatpush.msra.mxu0 0.0
    %85 = vmatpush.msra.mxu0 0.0
    %86 = vmatpush.msra.mxu0 0.0
    %87 = vmatpush.msra.mxu0 0.0
    %88 = vmatpush.msra.mxu0 0.0
    %89 = vmatpush.msra.mxu0 0.0
    %90 = vmatpush.msra.mxu0 0.0
    %91 = vmatpush.msra.mxu0 0.0
    %92 = vmatpush.msra.mxu0 0.0
    %93 = vmatpush.msra.mxu0 %v46
    %94 = vmatpush.msra.mxu0 %v45
    %95 = vmatpush.msra.mxu0 %v44
    %96 = vmatpush.msra.mxu0 %v43
    %97 = vmatpush.msra.mxu0 %v42
    %98 = vmatmul.f32.gmra.mxu0 %v80
    %v99 = vpop.f32.mrf.mxu0
    %v100 = vadd.f32 0.0, %v99
    %101 = vdwg.mxu0
    %v102 = vmul.f32 %v76, 0.1
    %v103 = vmul.f32 %v76, %v102
    %v104 = vsub.f32 %v100, %v103
    %v105 = vmul.f32 %v104, 0.11111111
    %v106 = vmax.f32 %v105, 0.0
    %v107 = vrsqrt.pop %v106
    %v108 = vmul.f32 %v107, %v106
    %v109 = vmul.f32 %v108, %v107
    %v110 = vmul.f32 0.5, %v109
    %v111 = vsub.f32 1.5, %v110
    %v112 = vmul.f32 %v107, %v111
    %v113 = vmul.f32 %v106, %v112
    %vm114 = vcmp.eq.f32.partialorder %v106, inf
    %v115 = vsel %vm114, %v106, %v113
    %vm116 = vcmp.eq.f32.partialorder %v106, 0.0
    %v117 = vand.u32 %v106, 2147483648
    %v118 = vsel %vm116, %v117, %v115
    %119 = vst [vmem:[#allocation7] sm:$0xff] %v118
    // Predicated region
    $region18: #{tpu_custom_call.1} parent=1 // pred_check
      _
    $region19: #{tpu_custom_call.1} parent=1 // pred_check_branch
      %121 = sbr.rel (0) target = $region21
    $region20: #{tpu_custom_call.1} parent=1 // pred_region
      %123 = vsyncadd [#allocation4], 0
      %s125 = sshll.u32 [#allocation7], 4
      %s126 = int_to_ptr.vmem [resolvable:$true] %s125
      %s127 = sshll.u32 %s2, 4
      %s128 = int_to_ptr.hbm [resolvable:$true] %s127
      %130 = dma.vmem_to_hbm [thread:$0]  %s126, 128, %s128, [#allocation4]
    $region21: #{tpu_custom_call.1} parent=1 // pred_fallthru
      _
    // Predicated region
    $region22: #{tpu_custom_call.1} parent=1 // pred_check
      _
    $region23: #{tpu_custom_call.1} parent=1 // pred_check_branch
      %132 = sbr.rel (0) target = $region25
    $region24: #{tpu_custom_call.1} parent=1 // pred_region
      %134 = dma.done [#allocation4], 128
    $region25: #{tpu_custom_call.1} parent=1 // pred_fallthru
      _
    %135 = vsyncpa [#allocation3], 1
    %136 = vsyncpa [#allocation6], 1
    %137 = vsyncpa [#allocation4], 1

</llo_original>
